<compile_context>
chip_gen: v6e
topology: v6e:2x2x1
jax: 0.10.0
libtpu: 0.0.40
codegen_flags: <defaults>
</compile_context>

<pallas_src>
import functools

import jax
import jax.numpy as jnp
from jax import lax
from jax.experimental import pallas as pl
from jax.experimental.pallas import tpu as pltpu


def _round_up(x, m):
    return (x + m - 1) // m * m


# ---------------------------------------------------------------------------
# StepFireLeak response kernel (cheap elementwise weight preprocessing; JAX glue)
# ---------------------------------------------------------------------------
def step_fire_leak_response(weight, step, leak):
    # weight: (N_out, S)  ->  (N_out, S, K) with K = step + leak
    kernel_size = step + leak
    t_axis = jnp.arange(kernel_size, dtype=weight.dtype)          # (K,)
    t_spike = t_axis / step                                       # (K,)
    w = weight[..., None]                                         # (N_out, S, 1)
    t_leak = -(t_axis - w * step) / leak + w                      # (N_out, S, K)
    kern = jnp.maximum(jnp.zeros_like(t_leak), jnp.minimum(t_spike, t_leak))
    return jnp.flip(kern, axis=-1)


# ---------------------------------------------------------------------------
# Fused Pallas kernel: conv1d potentials (one MXU matmul per time tile) + WTA
# ---------------------------------------------------------------------------
def _fused_conv_wta_kernel(x_ref, w_ref, b_ref, idx_ref, out_ref,
                           col_ref, pot_ref, dep_ref, *,
                           kernel_size, win_rows, theta, fodep, winners,
                           channels):
    # x_ref  : (T_xpad, S)      f32   zero-padded input spikes (full time axis)
    # w_ref  : (K*S, N_out)     bf16  response-kernel weights, (k, s) folded
    # b_ref  : (1, N_out)       f32   theta * bias
    # idx_ref: (2, N_out)       f32   row0: torch-order flat index n*C + c
    #                                 row1: n*C (winner-neuron test bound)
    # out_ref: (T_tile, N_out)  f32   output spikes for this time tile
    # col_ref: (T_tile, K*S)    bf16  im2col scratch
    # pot_ref: (T_tile, N_out)  f32   potentials scratch
    # dep_ref: (1, N_out)       f32   depression state (persists across tiles)
    t_tile, n_out = out_ref.shape
    s_total = x_ref.shape[1]
    tt = pl.program_id(1)

    # ---- conv1d(padding=K) for this tile: im2col + one bf16 MXU matmul ------
    t0 = pl.multiple_of(tt * t_tile, 8)                  # aligned window start
    x_win = x_ref[pl.ds(t0, win_rows), :]                # (T_tile + K - 1, S)
    for k in range(kernel_size):                         # K shifted copies
        col_ref[:, k * s_total:(k + 1) * s_total] = (
            x_win[k:k + t_tile, :].astype(jnp.bfloat16))
    pot_ref[...] = (
        jnp.dot(col_ref[...], w_ref[...], preferred_element_type=jnp.float32)
        + b_ref[...])

    # ---- winner-takes-all recurrence over the tile --------------------------
    torch_idx = idx_ref[0:1, :]                          # (1, N_out) f32
    lo = idx_ref[1:2, :]                                 # (1, N_out) f32
    big_idx = jnp.float32(n_out)                         # > any torch_idx
    theta_f = jnp.float32(theta)
    fodep_f = jnp.float32(fodep)
    channels_f = jnp.float32(channels)
    winners_lim = jnp.float32(channels * winners)        # dep replicated per chan

    @pl.when(tt == 0)
    def _():
        dep_ref[...] = jnp.zeros_like(dep_ref)

    def body(t, dep):                                    # dep: (1, N_out) f32
        p_t = pot_ref[pl.ds(t, 1), :]                    # (1, N_out)
        active = (dep == 0.0).astype(jnp.float32)
        n_dep = jnp.sum((dep != 0.0).astype(jnp.float32))
        k_act = (n_dep < winners_lim).astype(jnp.float32)
        masked = p_t * active * k_act                    # same masking as torch
        mx = jnp.max(masked)
        # argmax with torch's first-occurrence tie-break over (neuron, channel)
        win = jnp.min(jnp.where(masked == mx, torch_idx, big_idx))
        spike = (mx > theta_f).astype(jnp.float32)
        one_hot = jnp.where(torch_idx == win, spike, 0.0)
        out_ref[pl.ds(t, 1), :] = one_hot
        # depress every channel-copy of the winning neuron, then decay + clip
        hit = jnp.logical_and(win >= lo, win < lo + channels_f)
        dep = dep + hit.astype(jnp.float32) * (fodep_f * spike)
        return jnp.clip(dep - 1.0, 0.0, fodep_f - 1.0)

    dep_ref[...] = lax.fori_loop(0, t_tile, body, dep_ref[...])


# ---------------------------------------------------------------------------
# FullColumn in JAX/Pallas (inference / eval-mode forward, labels=None)
# ---------------------------------------------------------------------------
class FullColumnPallas:
    def __init__(self, synapses, neurons, input_channel=1, output_channel=1,
                 step=16, leak=32, bias=0.5, winners=None, fodep=None,
                 w_init=None, theta=None, dense=None, key=None):
        self.synapses = synapses
        self.neurons = neurons
        self.input_channel = input_channel
        self.output_channel = output_channel
        assert theta or dense, 'either theta or dense should be specified'
        self.theta = theta = theta or dense * (synapses * input_channel)
        self.dense = dense = dense or theta / (synapses * input_channel)
        w_init = w_init or dense
        self.step = step
        self.leak = leak
        self.kernel_size = step + leak
        self.padding = self.kernel_size
        self.fodep = fodep = fodep or self.kernel_size
        assert fodep >= self.kernel_size
        self.winners = winners or neurons

        key = jax.random.PRNGKey(0) if key is None else key
        # bias = zeros + bias ; weight ~ Exponential(rate=1/w_init), clipped to [0, 1]
        self.bias = jnp.zeros(output_channel * neurons, jnp.float32) + bias
        self.weight = jnp.clip(
            jax.random.exponential(
                key, (output_channel * neurons, input_channel * synapses),
                dtype=jnp.float32) * w_init,
            0.0, 1.0)

    def __call__(self, input_spikes):
        # input_spikes: (batch, in_channel, synapses, time) float32 {0, 1}
        batch, channel, synapses, time = input_spikes.shape
        s_total = channel * synapses
        n_out = self.output_channel * self.neurons
        k_size = self.kernel_size
        t_out = time + k_size + 1                   # conv1d(padding=K) out length

        # time tiling: multiple-of-8 tile (<=256 rows) keeps blocks
        # (8,128)-friendly and the per-tile scratch small (v7x VMEM friendly).
        t_tile = min(256, _round_up(t_out, 8))
        t_out_padded = _round_up(t_out, t_tile)
        win_rows = t_tile + k_size - 1
        t_xpad = t_out_padded + k_size - 1          # >= time + 2 * k_size

        # TODO(synk): SignalDualBackground was not provided with the module;
        # its dual-spike contribution to the potentials is treated as zero here.

        # ---- glue: time-major layout + conv1d-style zero padding of time
        x = input_spikes.reshape(batch, s_total, time).astype(jnp.float32)
        x = jnp.transpose(x, (0, 2, 1))                               # (B, T, S)
        x_pad = jnp.pad(x, ((0, 0), (k_size, t_xpad - time - k_size), (0, 0)))

        # ---- response kernel -> (K*S, N_out) bf16 weight block, f32 bias
        w_resp = step_fire_leak_response(self.weight, self.step, self.leak)
        w_t = jnp.transpose(w_resp, (2, 1, 0))                        # (K, S, N_out)
        w_flat = w_t.reshape(k_size * s_total, n_out).astype(jnp.bfloat16)
        bias_theta = (self.theta * self.bias).reshape(1, n_out).astype(jnp.float32)

        # ---- precomputed lane constants (avoids int div/mod inside the kernel)
        j_host = jnp.arange(n_out)                  # flat feature index c*N + n
        n_id = j_host % self.neurons
        c_id = j_host // self.neurons
        idx_aux = jnp.stack(
            [(n_id * self.output_channel + c_id).astype(jnp.float32),  # torch flat idx
             (n_id * self.output_channel).astype(jnp.float32)])        # n*C bound
        idx_aux = idx_aux.reshape(2, n_out)

        grid = (batch, t_out_padded // t_tile)
        kernel = functools.partial(
            _fused_conv_wta_kernel,
            kernel_size=k_size, win_rows=win_rows, theta=float(self.theta),
            fodep=float(self.fodep), winners=int(self.winners),
            channels=int(self.output_channel))

        spikes_flat = pl.pallas_call(
            kernel,
            out_shape=jax.ShapeDtypeStruct((batch, t_out_padded, n_out),
                                           jnp.float32),
            grid=grid,
            in_specs=[
                # full padded time per batch; re-DMA'd only when the batch index
                # changes (block index ignores the time-tile axis).
                pl.BlockSpec((None, t_xpad, s_total), lambda b, t: (b, 0, 0)),
                pl.BlockSpec((k_size * s_total, n_out), lambda b, t: (0, 0)),
                pl.BlockSpec((1, n_out), lambda b, t: (0, 0)),
                pl.BlockSpec((2, n_out), lambda b, t: (0, 0)),
            ],
            out_specs=pl.BlockSpec((None, t_tile, n_out),
                                   lambda b, t: (b, t, 0)),
            scratch_shapes=[
                pltpu.VMEM((t_tile, k_size * s_total), jnp.bfloat16),  # im2col
                pltpu.VMEM((t_tile, n_out), jnp.float32),              # potentials
                pltpu.VMEM((1, n_out), jnp.float32),                   # depression
            ],
            compiler_params=pltpu.CompilerParams(
                dimension_semantics=("parallel", "arbitrary")),
        )(x_pad, w_flat, bias_theta, idx_aux)

        # ---- glue: drop time padding, flat (c*N + n) order -> torch layout
        spikes = spikes_flat[:, :t_out, :]
        spikes = spikes.reshape(batch, t_out, self.output_channel, self.neurons)
        # (B, C_out, neurons, T_out) == torch winners.permute(1, 3, 2, 0).float()
        return jnp.transpose(spikes, (0, 2, 3, 1))


if __name__ == "__main__":
    key = jax.random.PRNGKey(0)
    k_w, k_x = jax.random.split(key)

    batch, in_channel, synapses, time = 2, 2, 16, 8
    neurons, out_channel = 4, 2
    step, leak = 4, 8

    col = FullColumnPallas(synapses, neurons,
                           input_channel=in_channel, output_channel=out_channel,
                           step=step, leak=leak, bias=0.5, dense=0.3, key=k_w)

    input_spikes = jax.random.bernoulli(
        k_x, 0.5, (batch, in_channel, synapses, time)).astype(jnp.float32)

    out = col(input_spikes)
    out = jax.block_until_ready(out)

    expected_t = time + col.kernel_size + 1
    assert out.shape == (batch, out_channel, neurons, expected_t), out.shape
    assert out.dtype == jnp.float32
    # structural sanity: spikes are {0,1} and at most one winner per timestep
    vals = jnp.unique(out).tolist()
    assert all(v in (0.0, 1.0) for v in vals), vals
    assert float(jnp.max(jnp.sum(out, axis=(1, 2)))) <= 1.0

    print("KERNEL_OK")
</pallas_src>

<mosaic_0001>
module attributes {stable_mosaic.version = 11 : i64} {
  func.func @_fused_conv_wta_kernel(%arg0: i32, %arg1: i32, %arg2: memref<1x35x32xf32, #tpu.memory_space<vmem>>, %arg3: memref<384x8xbf16, #tpu.memory_space<vmem>>, %arg4: memref<1x8xf32, #tpu.memory_space<vmem>>, %arg5: memref<2x8xf32, #tpu.memory_space<vmem>>, %arg6: memref<1x24x8xf32, #tpu.memory_space<vmem>>, %arg7: memref<24x384xbf16, #tpu.memory_space<vmem>>, %arg8: memref<24x8xf32, #tpu.memory_space<vmem>>, %arg9: memref<1x8xf32, #tpu.memory_space<vmem>>) attributes {dimension_semantics = [#tpu.dimension_semantics<parallel>, #tpu.dimension_semantics<arbitrary>], iteration_bounds = array<i64: 2, 1>, scalar_prefetch = 0 : i64, scratch_operands = 3 : i64, tpu.core_type = #tpu.core_type<tc>, window_params = [{transform_indices = @transform_0, window_bounds = array<i64: 1, 35, 32>}, {pipeline_mode = #tpu.pipeline_mode<synchronous>, transform_indices = @transform_1, window_bounds = array<i64: 384, 8>}, {pipeline_mode = #tpu.pipeline_mode<synchronous>, transform_indices = @transform_2, window_bounds = array<i64: 1, 8>}, {pipeline_mode = #tpu.pipeline_mode<synchronous>, transform_indices = @transform_3, window_bounds = array<i64: 2, 8>}, {transform_indices = @transform_4, window_bounds = array<i64: 1, 24, 8>}]} {
    %c24_i32 = arith.constant 24 : i32
    %0 = arith.muli %arg1, %c24_i32 : i32
    %1 = tpu.assume_multiple %0, 8 : i32
    %c0 = arith.constant 0 : index
    %2 = arith.index_cast %1 : i32 to index
    %c0_0 = arith.constant 0 : index
    %3 = vector.load %arg2[%c0, %2, %c0_0] : memref<1x35x32xf32, #tpu.memory_space<vmem>>, vector<1x35x32xf32>
    %4 = vector.shape_cast %3 : vector<1x35x32xf32> to vector<35x32xf32>
    %5 = vector.extract_strided_slice %4 {offsets = [0, 0], sizes = [24, 32], strides = [1, 1]} : vector<35x32xf32> to vector<24x32xf32>
    %6 = arith.truncf %5 : vector<24x32xf32> to vector<24x32xbf16>
    %c0_1 = arith.constant 0 : index
    %c0_2 = arith.constant 0 : index
    %7 = vector.load %arg7[%c0_1, %c0_2] : memref<24x384xbf16, #tpu.memory_space<vmem>>, vector<24x32xbf16>
    tpu.vector_store %arg7[%c0_1, %c0_2], %6 {strides = array<i32>} : memref<24x384xbf16, #tpu.memory_space<vmem>>, vector<24x32xbf16>,
    %8 = vector.extract_strided_slice %4 {offsets = [1, 0], sizes = [24, 32], strides = [1, 1]} : vector<35x32xf32> to vector<24x32xf32>
    %9 = arith.truncf %8 : vector<24x32xf32> to vector<24x32xbf16>
    %c0_3 = arith.constant 0 : index
    %c32 = arith.constant 32 : index
    %10 = vector.load %arg7[%c0_3, %c32] : memref<24x384xbf16, #tpu.memory_space<vmem>>, vector<24x32xbf16>
    tpu.vector_store %arg7[%c0_3, %c32], %9 {strides = array<i32>} : memref<24x384xbf16, #tpu.memory_space<vmem>>, vector<24x32xbf16>,
    %11 = vector.extract_strided_slice %4 {offsets = [2, 0], sizes = [24, 32], strides = [1, 1]} : vector<35x32xf32> to vector<24x32xf32>
    %12 = arith.truncf %11 : vector<24x32xf32> to vector<24x32xbf16>
    %c0_4 = arith.constant 0 : index
    %c64 = arith.constant 64 : index
    %13 = vector.load %arg7[%c0_4, %c64] : memref<24x384xbf16, #tpu.memory_space<vmem>>, vector<24x32xbf16>
    tpu.vector_store %arg7[%c0_4, %c64], %12 {strides = array<i32>} : memref<24x384xbf16, #tpu.memory_space<vmem>>, vector<24x32xbf16>,
    %14 = vector.extract_strided_slice %4 {offsets = [3, 0], sizes = [24, 32], strides = [1, 1]} : vector<35x32xf32> to vector<24x32xf32>
    %15 = arith.truncf %14 : vector<24x32xf32> to vector<24x32xbf16>
    %c0_5 = arith.constant 0 : index
    %c96 = arith.constant 96 : index
    %16 = vector.load %arg7[%c0_5, %c96] : memref<24x384xbf16, #tpu.memory_space<vmem>>, vector<24x32xbf16>
    tpu.vector_store %arg7[%c0_5, %c96], %15 {strides = array<i32>} : memref<24x384xbf16, #tpu.memory_space<vmem>>, vector<24x32xbf16>,
    %17 = vector.extract_strided_slice %4 {offsets = [4, 0], sizes = [24, 32], strides = [1, 1]} : vector<35x32xf32> to vector<24x32xf32>
    %18 = arith.truncf %17 : vector<24x32xf32> to vector<24x32xbf16>
    %c0_6 = arith.constant 0 : index
    %c128 = arith.constant 128 : index
    %19 = vector.load %arg7[%c0_6, %c128] : memref<24x384xbf16, #tpu.memory_space<vmem>>, vector<24x32xbf16>
    tpu.vector_store %arg7[%c0_6, %c128], %18 {strides = array<i32>} : memref<24x384xbf16, #tpu.memory_space<vmem>>, vector<24x32xbf16>,
    %20 = vector.extract_strided_slice %4 {offsets = [5, 0], sizes = [24, 32], strides = [1, 1]} : vector<35x32xf32> to vector<24x32xf32>
    %21 = arith.truncf %20 : vector<24x32xf32> to vector<24x32xbf16>
    %c0_7 = arith.constant 0 : index
    %c160 = arith.constant 160 : index
    %22 = vector.load %arg7[%c0_7, %c160] : memref<24x384xbf16, #tpu.memory_space<vmem>>, vector<24x32xbf16>
    tpu.vector_store %arg7[%c0_7, %c160], %21 {strides = array<i32>} : memref<24x384xbf16, #tpu.memory_space<vmem>>, vector<24x32xbf16>,
    %23 = vector.extract_strided_slice %4 {offsets = [6, 0], sizes = [24, 32], strides = [1, 1]} : vector<35x32xf32> to vector<24x32xf32>
    %24 = arith.truncf %23 : vector<24x32xf32> to vector<24x32xbf16>
    %c0_8 = arith.constant 0 : index
    %c192 = arith.constant 192 : index
    %25 = vector.load %arg7[%c0_8, %c192] : memref<24x384xbf16, #tpu.memory_space<vmem>>, vector<24x32xbf16>
    tpu.vector_store %arg7[%c0_8, %c192], %24 {strides = array<i32>} : memref<24x384xbf16, #tpu.memory_space<vmem>>, vector<24x32xbf16>,
    %26 = vector.extract_strided_slice %4 {offsets = [7, 0], sizes = [24, 32], strides = [1, 1]} : vector<35x32xf32> to vector<24x32xf32>
    %27 = arith.truncf %26 : vector<24x32xf32> to vector<24x32xbf16>
    %c0_9 = arith.constant 0 : index
    %c224 = arith.constant 224 : index
    %28 = vector.load %arg7[%c0_9, %c224] : memref<24x384xbf16, #tpu.memory_space<vmem>>, vector<24x32xbf16>
    tpu.vector_store %arg7[%c0_9, %c224], %27 {strides = array<i32>} : memref<24x384xbf16, #tpu.memory_space<vmem>>, vector<24x32xbf16>,
    %29 = vector.extract_strided_slice %4 {offsets = [8, 0], sizes = [24, 32], strides = [1, 1]} : vector<35x32xf32> to vector<24x32xf32>
    %30 = arith.truncf %29 : vector<24x32xf32> to vector<24x32xbf16>
    %c0_10 = arith.constant 0 : index
    %c256 = arith.constant 256 : index
    %31 = vector.load %arg7[%c0_10, %c256] : memref<24x384xbf16, #tpu.memory_space<vmem>>, vector<24x32xbf16>
    tpu.vector_store %arg7[%c0_10, %c256], %30 {strides = array<i32>} : memref<24x384xbf16, #tpu.memory_space<vmem>>, vector<24x32xbf16>,
    %32 = vector.extract_strided_slice %4 {offsets = [9, 0], sizes = [24, 32], strides = [1, 1]} : vector<35x32xf32> to vector<24x32xf32>
    %33 = arith.truncf %32 : vector<24x32xf32> to vector<24x32xbf16>
    %c0_11 = arith.constant 0 : index
    %c288 = arith.constant 288 : index
    %34 = vector.load %arg7[%c0_11, %c288] : memref<24x384xbf16, #tpu.memory_space<vmem>>, vector<24x32xbf16>
    tpu.vector_store %arg7[%c0_11, %c288], %33 {strides = array<i32>} : memref<24x384xbf16, #tpu.memory_space<vmem>>, vector<24x32xbf16>,
    %35 = vector.extract_strided_slice %4 {offsets = [10, 0], sizes = [24, 32], strides = [1, 1]} : vector<35x32xf32> to vector<24x32xf32>
    %36 = arith.truncf %35 : vector<24x32xf32> to vector<24x32xbf16>
    %c0_12 = arith.constant 0 : index
    %c320 = arith.constant 320 : index
    %37 = vector.load %arg7[%c0_12, %c320] : memref<24x384xbf16, #tpu.memory_space<vmem>>, vector<24x32xbf16>
    tpu.vector_store %arg7[%c0_12, %c320], %36 {strides = array<i32>} : memref<24x384xbf16, #tpu.memory_space<vmem>>, vector<24x32xbf16>,
    %38 = vector.extract_strided_slice %4 {offsets = [11, 0], sizes = [24, 32], strides = [1, 1]} : vector<35x32xf32> to vector<24x32xf32>
    %39 = arith.truncf %38 : vector<24x32xf32> to vector<24x32xbf16>
    %c0_13 = arith.constant 0 : index
    %c352 = arith.constant 352 : index
    %40 = vector.load %arg7[%c0_13, %c352] : memref<24x384xbf16, #tpu.memory_space<vmem>>, vector<24x32xbf16>
    tpu.vector_store %arg7[%c0_13, %c352], %39 {strides = array<i32>} : memref<24x384xbf16, #tpu.memory_space<vmem>>, vector<24x32xbf16>,
    %c0_14 = arith.constant 0 : index
    %c0_15 = arith.constant 0 : index
    %41 = vector.load %arg7[%c0_14, %c0_15] : memref<24x384xbf16, #tpu.memory_space<vmem>>, vector<24x384xbf16>
    %c0_16 = arith.constant 0 : index
    %c0_17 = arith.constant 0 : index
    %42 = vector.load %arg3[%c0_16, %c0_17] : memref<384x8xbf16, #tpu.memory_space<vmem>>, vector<384x8xbf16>
    %cst = arith.constant dense<0.000000e+00> : vector<24x8xf32>
    %43 = tpu.matmul %41, %42, %cst {dimension_numbers = #tpu.dot_dimension_numbers<[1], [0], [0], [1], [0, 0, 1, 1], [], []>} : vector<24x384xbf16>, vector<384x8xbf16>, vector<24x8xf32> -> vector<24x8xf32>
    %c0_18 = arith.constant 0 : index
    %c0_19 = arith.constant 0 : index
    %44 = vector.load %arg4[%c0_18, %c0_19] : memref<1x8xf32, #tpu.memory_space<vmem>>, vector<1x8xf32>
    %45 = vector.broadcast %44 : vector<1x8xf32> to vector<24x8xf32>
    %46 = arith.addf %43, %45 : vector<24x8xf32>
    %c0_20 = arith.constant 0 : index
    %c0_21 = arith.constant 0 : index
    %47 = vector.load %arg8[%c0_20, %c0_21] : memref<24x8xf32, #tpu.memory_space<vmem>>, vector<24x8xf32>
    tpu.vector_store %arg8[%c0_20, %c0_21], %46 {strides = array<i32>} : memref<24x8xf32, #tpu.memory_space<vmem>>, vector<24x8xf32>,
    %c0_22 = arith.constant 0 : index
    %c0_23 = arith.constant 0 : index
    %48 = vector.load %arg5[%c0_22, %c0_23] : memref<2x8xf32, #tpu.memory_space<vmem>>, vector<1x8xf32>
    %c1 = arith.constant 1 : index
    %c0_24 = arith.constant 0 : index
    %49 = vector.load %arg5[%c1, %c0_24] : memref<2x8xf32, #tpu.memory_space<vmem>>, vector<1x8xf32>
    %c0_i32 = arith.constant 0 : i32
    %50 = arith.cmpi eq, %arg1, %c0_i32 : i32
    %51 = arith.extui %50 : i1 to i32
    %c0_i32_25 = arith.constant 0 : i32
    %52 = arith.cmpi ne, %51, %c0_i32_25 : i32
    scf.if %52 {
      %cst_38 = arith.constant 0.000000e+00 : f32
      %57 = vector.broadcast %cst_38 : f32 to vector<1x8xf32>
      %c0_39 = arith.constant 0 : index
      %c0_40 = arith.constant 0 : index
      %58 = vector.load %arg9[%c0_39, %c0_40] : memref<1x8xf32, #tpu.memory_space<vmem>>, vector<1x8xf32>
      tpu.vector_store %arg9[%c0_39, %c0_40], %57 {strides = array<i32>} : memref<1x8xf32, #tpu.memory_space<vmem>>, vector<1x8xf32>,
    } else {
    }
    %c0_26 = arith.constant 0 : index
    %c0_27 = arith.constant 0 : index
    %53 = vector.load %arg9[%c0_26, %c0_27] : memref<1x8xf32, #tpu.memory_space<vmem>>, vector<1x8xf32>
    %cst_28 = arith.constant 8.000000e+00 : f32
    %cst_29 = arith.constant 8.000000e+00 : f32
    %cst_30 = arith.constant 9.600000e+00 : f32
    %cst_31 = arith.constant 2.000000e+00 : f32
    %cst_32 = arith.constant 1.200000e+01 : f32
    %c0_i32_33 = arith.constant 0 : i32
    %c24_i32_34 = arith.constant 24 : i32
    %54 = arith.addi %c0_i32_33, %c24_i32_34 : i32
    %c1_i32 = arith.constant 1 : i32
    %55 = scf.for %arg10 = %c0_i32_33 to %54 step %c1_i32 iter_args(%arg11 = %53) -> (vector<1x8xf32>)  : i32 {
      %57 = arith.index_cast %arg10 : i32 to index
      %c0_38 = arith.constant 0 : index
      %58 = vector.load %arg8[%57, %c0_38] : memref<24x8xf32, #tpu.memory_space<vmem>>, vector<1x8xf32>
      %cst_39 = arith.constant 0.000000e+00 : f32
      %59 = vector.broadcast %cst_39 : f32 to vector<1x8xf32>
      %60 = arith.cmpf oeq, %arg11, %59 : vector<1x8xf32>
      %61 = arith.extui %60 : vector<1x8xi1> to vector<1x8xi32>
      %62 = arith.sitofp %61 : vector<1x8xi32> to vector<1x8xf32>
      %cst_40 = arith.constant 0.000000e+00 : f32
      %63 = vector.broadcast %cst_40 : f32 to vector<1x8xf32>
      %64 = arith.cmpf one, %arg11, %63 : vector<1x8xf32>
      %65 = arith.extui %64 : vector<1x8xi1> to vector<1x8xi32>
      %66 = arith.sitofp %65 : vector<1x8xi32> to vector<1x8xf32>
      %67 = vector.shape_cast %66 : vector<1x8xf32> to vector<1x1x8xf32>
      %cst_41 = arith.constant dense<0.000000e+00> : vector<1xf32>
      %68 = vector.multi_reduction <add>, %67, %cst_41 [1, 2] : vector<1x1x8xf32> to vector<1xf32>
      %69 = vector.shape_cast %68 : vector<1xf32> to vector<1x1x1xf32>
      %70 = vector.extract %69[0, 0, 0] : f32 from vector<1x1x1xf32>
      %71 = arith.cmpf olt, %70, %cst_28 : f32
      %72 = arith.extui %71 : i1 to i32
      %73 = arith.sitofp %72 : i32 to f32
      %74 = arith.mulf %58, %62 : vector<1x8xf32>
      %75 = vector.broadcast %73 : f32 to vector<1x8xf32>
      %76 = arith.mulf %74, %75 : vector<1x8xf32>
      %77 = vector.shape_cast %76 : vector<1x8xf32> to vector<1x1x8xf32>
      %cst_42 = arith.constant dense<0xFF800000> : vector<1xf32>
      %78 = vector.multi_reduction <maximumf>, %77, %cst_42 [1, 2] : vector<1x1x8xf32> to vector<1xf32>
      %79 = vector.shape_cast %78 : vector<1xf32> to vector<1x1x1xf32>
      %80 = vector.extract %79[0, 0, 0] : f32 from vector<1x1x1xf32>
      %81 = vector.broadcast %80 : f32 to vector<1x8xf32>
      %82 = arith.cmpf oeq, %76, %81 : vector<1x8xf32>
      %83 = vector.broadcast %cst_29 : f32 to vector<1x8xf32>
      %84 = arith.select %82, %48, %83 : vector<1x8xi1>, vector<1x8xf32>
      %85 = vector.shape_cast %84 : vector<1x8xf32> to vector<1x1x8xf32>
      %cst_43 = arith.constant dense<0x7F800000> : vector<1xf32>
      %86 = vector.multi_reduction <minimumf>, %85, %cst_43 [1, 2] : vector<1x1x8xf32> to vector<1xf32>
      %87 = vector.shape_cast %86 : vector<1xf32> to vector<1x1x1xf32>
      %88 = vector.extract %87[0, 0, 0] : f32 from vector<1x1x1xf32>
      %89 = arith.cmpf ogt, %80, %cst_30 : f32
      %90 = arith.extui %89 : i1 to i32
      %91 = arith.sitofp %90 : i32 to f32
      %92 = vector.broadcast %88 : f32 to vector<1x8xf32>
      %93 = arith.cmpf oeq, %48, %92 : vector<1x8xf32>
      %cst_44 = arith.constant 0.000000e+00 : f32
      %94 = vector.broadcast %91 : f32 to vector<1x8xf32>
      %95 = vector.broadcast %cst_44 : f32 to vector<1x8xf32>
      %96 = arith.select %93, %94, %95 : vector<1x8xi1>, vector<1x8xf32>
      %c0_45 = arith.constant 0 : index
      %97 = arith.index_cast %arg10 : i32 to index
      %c0_46 = arith.constant 0 : index
      %98 = vector.load %arg6[%c0_45, %97, %c0_46] : memref<1x24x8xf32, #tpu.memory_space<vmem>>, vector<1x1x8xf32>
      %99 = vector.shape_cast %98 : vector<1x1x8xf32> to vector<1x8xf32>
      %100 = vector.shape_cast %96 : vector<1x8xf32> to vector<1x1x8xf32>
      tpu.vector_store %arg6[%c0_45, %97, %c0_46], %100 {strides = array<i32>} : memref<1x24x8xf32, #tpu.memory_space<vmem>>, vector<1x1x8xf32>,
      %101 = vector.broadcast %88 : f32 to vector<1x8xf32>
      %102 = arith.cmpf oge, %101, %49 : vector<1x8xf32>
      %103 = vector.broadcast %cst_31 : f32 to vector<1x8xf32>
      %104 = arith.addf %49, %103 : vector<1x8xf32>
      %105 = vector.broadcast %88 : f32 to vector<1x8xf32>
      %106 = arith.cmpf olt, %105, %104 : vector<1x8xf32>
      %107 = arith.andi %102, %106 : vector<1x8xi1>
      %108 = arith.extui %107 : vector<1x8xi1> to vector<1x8xi32>
      %109 = arith.sitofp %108 : vector<1x8xi32> to vector<1x8xf32>
      %110 = arith.mulf %cst_32, %91 : f32
      %111 = vector.broadcast %110 : f32 to vector<1x8xf32>
      %112 = arith.mulf %109, %111 : vector<1x8xf32>
      %113 = arith.addf %arg11, %112 : vector<1x8xf32>
      %cst_47 = arith.constant 1.000000e+00 : f32
      %114 = vector.broadcast %cst_47 : f32 to vector<1x8xf32>
      %115 = arith.subf %113, %114 : vector<1x8xf32>
      %cst_48 = arith.constant 1.000000e+00 : f32
      %116 = arith.subf %cst_32, %cst_48 : f32
      %cst_49 = arith.constant 0.000000e+00 : f32
      %117 = vector.broadcast %cst_49 : f32 to vector<1x8xf32>
      %118 = arith.maximumf %117, %115 : vector<1x8xf32>
      %119 = vector.broadcast %116 : f32 to vector<1x8xf32>
      %120 = arith.minimumf %119, %118 : vector<1x8xf32>
      scf.yield %120 : vector<1x8xf32>
    }
    %c24_i32_35 = arith.constant 24 : i32
    %c0_36 = arith.constant 0 : index
    %c0_37 = arith.constant 0 : index
    %56 = vector.load %arg9[%c0_36, %c0_37] : memref<1x8xf32, #tpu.memory_space<vmem>>, vector<1x8xf32>
    tpu.vector_store %arg9[%c0_36, %c0_37], %55 {strides = array<i32>} : memref<1x8xf32, #tpu.memory_space<vmem>>, vector<1x8xf32>,
    return
  }
  func.func @transform_0(%arg0: i32, %arg1: i32) -> (i32, i32, i32) {
    %c0_i32 = arith.constant 0 : i32
    %c0_i32_0 = arith.constant 0 : i32
    %c0_i32_1 = arith.constant 0 : i32
    return %arg0, %c0_i32, %c0_i32_0 : i32, i32, i32
  }
  func.func @transform_1(%arg0: i32, %arg1: i32) -> (i32, i32) {
    %c0_i32 = arith.constant 0 : i32
    %c0_i32_0 = arith.constant 0 : i32
    %c0_i32_1 = arith.constant 0 : i32
    return %c0_i32, %c0_i32_0 : i32, i32
  }
  func.func @transform_2(%arg0: i32, %arg1: i32) -> (i32, i32) {
    %c0_i32 = arith.constant 0 : i32
    %c0_i32_0 = arith.constant 0 : i32
    %c0_i32_1 = arith.constant 0 : i32
    return %c0_i32, %c0_i32_0 : i32, i32
  }
  func.func @transform_3(%arg0: i32, %arg1: i32) -> (i32, i32) {
    %c0_i32 = arith.constant 0 : i32
    %c0_i32_0 = arith.constant 0 : i32
    %c0_i32_1 = arith.constant 0 : i32
    return %c0_i32, %c0_i32_0 : i32, i32
  }
  func.func @transform_4(%arg0: i32, %arg1: i32) -> (i32, i32, i32) {
    %c0_i32 = arith.constant 0 : i32
    %c0_i32_0 = arith.constant 0 : i32
    return %arg0, %arg1, %c0_i32 : i32, i32, i32
  }
}

</mosaic_0001>

<llo_original>
// kernel: tpu_custom_call.1
$region0: #{tpu_custom_call.1}
  #allocation0 [shape = 'u32[]', space=smem, size = 0x4, offset = 0x4, fixed_abs, tag = 'smem constant byte address 0x4 - core index']
  #allocation1 [shape = 'u32[144,128]{1,0:T(1,128)}', space=vmem, size = 0x12000, scoped, tag = 'internal scratch']
  #allocation2 [shape = 'bf16[24,384]{1,0:T(8,128)(2,1)}', space=vmem, size = 0x4800, scoped, tag = 'scratch operand']
  #allocation3 [shape = 'f32[24,8]{1,0:T(8,128)}', space=vmem, size = 0x3000, scoped, tag = 'scratch operand']
  #allocation4 [shape = 'f32[1,8]{1,0:T(1,128)}', space=vmem, size = 0x200, scoped, tag = 'scratch operand']
  %s0 = inlined_call_operand.vmem [shape: f32[2,35,32], index: 0, kind: input, shape index: {}]
  %s1 = inlined_call_operand.vmem [shape: bf16[384,8], index: 1, kind: input, shape index: {}]
  %s2 = inlined_call_operand.vmem [shape: f32[1,8], index: 2, kind: input, shape index: {}]
  %s3 = inlined_call_operand.vmem [shape: f32[2,8], index: 3, kind: input, shape index: {}]
  %s4 = inlined_call_operand.vmem [shape: f32[2,24,8], index: 4, kind: output, shape index: {}]
  %s5 = sld [smem:[#allocation0]]
  $region60: #{tpu_custom_call.1} parent=0
    _
  %s7 = ssub.s32 1, %s5
  %s8 = scalar_select 0, %s7, %s5
  loop: start=0, step=1, limit=4
  $region2: #{tpu_custom_call.1} parent=0 // loop_pre_header
    _
  $region3: #{tpu_custom_call.1} parent=0 // loop_header
    %s10 = sphi 0, %s14
    %p11 = scmp.ge.s32.totalorder %s10, 4
    %s17 = sphi 0, %s29
    %s18 = sphi 0, %s25
    %s19 = sphi 0, %s17
    %s20 = sphi 0, %s18
    %s21 = sphi 0, %s19
    %s22 = sphi 0, %s20
    %s32 = sphi 0, %s34
    %s35 = sphi 0, %s32
    %s36 = sphi 0, %s35
    %s52 = sphi 0, %s36
    %s56 = sphi 0, %s56
    %s58 = sphi 0, %s56
    %s59 = sphi 0, %s58
    %s73 = sphi 0, %s59
    %s77 = sphi 0, %s77
    %s79 = sphi 0, %s77
    %s80 = sphi 0, %s79
    %s94 = sphi 0, %s80
    %s98 = sphi 0, %s98
    %s100 = sphi 0, %s98
    %s101 = sphi 0, %s100
    %s115 = sphi 0, %s101
    %s123 = sphi 0, %s125
    %s126 = sphi 0, %s123
    %s127 = sphi 0, %s126
    %s143 = sphi 0, %s127
  $region4: #{tpu_custom_call.1} parent=0 // loop_header_branch
    %13 = sbr.rel (%p11) target = $region8
  $region5: #{tpu_custom_call.1} parent=0 // loop_body
    %s15 = ssub.s32 %s10, 1
    %s16 = ssub.s32 %s10, 2
    %s23 = sadd.s32 1, %s18
    %p24 = scmp.ge.s32.totalorder %s23, 1
    %s25 = scalar_select %p24, 0, %s23
    %s26 = sadd.s32 1, %s17
    %s27 = scalar_select %p24, %s26, %s17
    %p28 = scmp.ge.s32.totalorder %s27, 2
    %s29 = scalar_select %p28, 0, %s27
    %s30 = ssub.s32 %s17, %s29
    %p31 = scmp.eq.s32.totalorder %s30, 0
    %s33 = sadd.s32 %s32, 1
    %s34 = scalar_select %p31, %s32, %s33
    %p37 = pneg %p31
    %p38 = scmp.eq.s32.totalorder %s10, 1
    %p39 = por %p37, %p38
    %p40 = scmp.ne.s32.totalorder %s32, %s35
    %p41 = scmp.eq.s32.totalorder %s10, 0
    %p42 = por %p40, %p41
    %p43 = scmp.ne.s32.totalorder %s32, %s35
    %p44 = scmp.eq.s32.totalorder %s15, 1
    %p45 = por %p43, %p44
    %p46 = scmp.ne.s32.totalorder %s35, %s36
    %p47 = scmp.eq.s32.totalorder %s15, 0
    %p48 = por %p46, %p47
    %p49 = scmp.ne.s32.totalorder %s35, %s36
    %p50 = scmp.eq.s32.totalorder %s16, 1
    %p51 = por %p49, %p50
    %p53 = scmp.ne.s32.totalorder %s36, %s52
    %p54 = scmp.eq.s32.totalorder %s16, 0
    %p55 = por %p53, %p54
    %s57 = sadd.s32 %s56, 1
    %p60 = scmp.eq.s32.totalorder %s10, 1
    %p61 = scmp.ne.s32.totalorder %s56, %s58
    %p62 = scmp.eq.s32.totalorder %s10, 0
    %p63 = por %p61, %p62
    %p64 = scmp.ne.s32.totalorder %s56, %s58
    %p65 = scmp.eq.s32.totalorder %s15, 1
    %p66 = por %p64, %p65
    %p67 = scmp.ne.s32.totalorder %s58, %s59
    %p68 = scmp.eq.s32.totalorder %s15, 0
    %p69 = por %p67, %p68
    %p70 = scmp.ne.s32.totalorder %s58, %s59
    %p71 = scmp.eq.s32.totalorder %s16, 1
    %p72 = por %p70, %p71
    %p74 = scmp.ne.s32.totalorder %s59, %s73
    %p75 = scmp.eq.s32.totalorder %s16, 0
    %p76 = por %p74, %p75
    %s78 = sadd.s32 %s77, 1
    %p81 = scmp.eq.s32.totalorder %s10, 1
    %p82 = scmp.ne.s32.totalorder %s77, %s79
    %p83 = scmp.eq.s32.totalorder %s10, 0
    %p84 = por %p82, %p83
    %p85 = scmp.ne.s32.totalorder %s77, %s79
    %p86 = scmp.eq.s32.totalorder %s15, 1
    %p87 = por %p85, %p86
    %p88 = scmp.ne.s32.totalorder %s79, %s80
    %p89 = scmp.eq.s32.totalorder %s15, 0
    %p90 = por %p88, %p89
    %p91 = scmp.ne.s32.totalorder %s79, %s80
    %p92 = scmp.eq.s32.totalorder %s16, 1
    %p93 = por %p91, %p92
    %p95 = scmp.ne.s32.totalorder %s80, %s94
    %p96 = scmp.eq.s32.totalorder %s16, 0
    %p97 = por %p95, %p96
    %s99 = sadd.s32 %s98, 1
    %p102 = scmp.eq.s32.totalorder %s10, 1
    %p103 = scmp.ne.s32.totalorder %s98, %s100
    %p104 = scmp.eq.s32.totalorder %s10, 0
    %p105 = por %p103, %p104
    %p106 = scmp.ne.s32.totalorder %s98, %s100
    %p107 = scmp.eq.s32.totalorder %s15, 1
    %p108 = por %p106, %p107
    %p109 = scmp.ne.s32.totalorder %s100, %s101
    %p110 = scmp.eq.s32.totalorder %s15, 0
    %p111 = por %p109, %p110
    %p112 = scmp.ne.s32.totalorder %s100, %s101
    %p113 = scmp.eq.s32.totalorder %s16, 1
    %p114 = por %p112, %p113
    %p116 = scmp.ne.s32.totalorder %s101, %s115
    %p117 = scmp.eq.s32.totalorder %s16, 0
    %p118 = por %p116, %p117
    %s119 = ssub.s32 %s17, %s29
    %s120 = ssub.s32 %s18, %s25
    %s121 = sor.u32 %s119, %s120
    %p122 = scmp.eq.s32.totalorder %s121, 0
    %s124 = sadd.s32 %s123, 1
    %s125 = scalar_select %p122, %s123, %s124
    %p128 = pneg %p122
    %p129 = scmp.eq.s32.totalorder %s10, 1
    %p130 = por %p128, %p129
    %p131 = scmp.ne.s32.totalorder %s123, %s126
    %p132 = scmp.eq.s32.totalorder %s10, 0
    %p133 = por %p131, %p132
    %p134 = scmp.ne.s32.totalorder %s123, %s126
    %p135 = scmp.eq.s32.totalorder %s15, 1
    %p136 = por %p134, %p135
    %p137 = scmp.ne.s32.totalorder %s126, %s127
    %p138 = scmp.eq.s32.totalorder %s15, 0
    %p139 = por %p137, %p138
    %p140 = scmp.ne.s32.totalorder %s126, %s127
    %p141 = scmp.eq.s32.totalorder %s16, 1
    %p142 = por %p140, %p141
    %p144 = scmp.ne.s32.totalorder %s127, %s143
    %p145 = scmp.eq.s32.totalorder %s16, 0
    %p146 = por %p144, %p145
    %p147 = scmp.le.s32.totalorder 1, %s10
    %p148 = scmp.lt.s32.totalorder %s10, 3
    %p149 = pnand %p147, %p148
    %p150 = pneg %p149
    // Predicated region
    $region9: #{tpu_custom_call.1} parent=5 // pred_check
      _
    $region10: #{tpu_custom_call.1} parent=5 // pred_check_branch
      %152 = sbr.rel (%p149) target = $region12
    $region11: #{tpu_custom_call.1} parent=5 // pred_region
      %s153 = ssub.s32 %s10, 1
      // Predicated region
      $region13: #{tpu_custom_call.1} parent=11 // pred_check
        %p154 = pneg %p69
      $region14: #{tpu_custom_call.1} parent=11 // pred_check_branch
        %156 = sbr.rel (%p154) target = $region16
      $region15: #{tpu_custom_call.1} parent=11 // pred_region
        _
      $region16: #{tpu_custom_call.1} parent=11 // pred_fallthru
        _
      // Predicated region
      $region17: #{tpu_custom_call.1} parent=11 // pred_check
        %p157 = pneg %p90
      $region18: #{tpu_custom_call.1} parent=11 // pred_check_branch
        %159 = sbr.rel (%p157) target = $region20
      $region19: #{tpu_custom_call.1} parent=11 // pred_region
        _
      $region20: #{tpu_custom_call.1} parent=11 // pred_fallthru
        _
      // Predicated region
      $region21: #{tpu_custom_call.1} parent=11 // pred_check
        %p160 = pneg %p111
      $region22: #{tpu_custom_call.1} parent=11 // pred_check_branch
        %162 = sbr.rel (%p160) target = $region24
      $region23: #{tpu_custom_call.1} parent=11 // pred_region
        _
      $region24: #{tpu_custom_call.1} parent=11 // pred_fallthru
        _
    $region12: #{tpu_custom_call.1} parent=5 // pred_fallthru
      _
    %p163 = scmp.lt.s32.totalorder %s10, 2
    // Predicated region
    $region25: #{tpu_custom_call.1} parent=5 // pred_check
      %p164 = pneg %p163
    $region26: #{tpu_custom_call.1} parent=5 // pred_check_branch
      %166 = sbr.rel (%p164) target = $region28
    $region27: #{tpu_custom_call.1} parent=5 // pred_region
      // Predicated region
      $region29: #{tpu_custom_call.1} parent=27 // pred_check
        %p167 = pneg %p42
      $region30: #{tpu_custom_call.1} parent=27 // pred_check_branch
        %169 = sbr.rel (%p167) target = $region32
      $region31: #{tpu_custom_call.1} parent=27 // pred_region
        %p170 = scmp.lt.s32.totalorder %s17, 1
        %s171 = scalar_select %p170, %s17, 1
        %s172 = smul.addr %s171, 5
        %s173 = smul.addr %s172, 8
        %s174 = scalar_lea.vmem %s0, %s173
      $region32: #{tpu_custom_call.1} parent=27 // pred_fallthru
        _
    $region28: #{tpu_custom_call.1} parent=5 // pred_fallthru
      _
    %p175 = scmp.le.s32.totalorder 1, %s10
    %p176 = scmp.lt.s32.totalorder %s10, 3
    %p177 = pnand %p175, %p176
    %p178 = pneg %p177
    // Predicated region
    $region33: #{tpu_custom_call.1} parent=5 // pred_check
      _
    $region34: #{tpu_custom_call.1} parent=5 // pred_check_branch
      %180 = sbr.rel (%p177) target = $region36
    $region35: #{tpu_custom_call.1} parent=5 // pred_region
      %s181 = ssub.s32 %s10, 1
      %p182 = scmp.lt.s32.totalorder %s19, 1
      %s183 = scalar_select %p182, %s19, 1
      %s184 = smul.addr %s183, 5
      %s185 = smul.addr %s184, 8
      %s186 = scalar_lea.vmem %s0, %s185
      %p187 = pneg %p48
      %p188 = pneg %p45
      %p189 = pneg %p69
      %p190 = pneg %p66
      %p191 = pneg %p90
      %p192 = pneg %p87
      %p193 = pneg %p111
      %p194 = pneg %p108
      %p195 = pneg %p139
      %p196 = pneg %p136
      %s197 = smul.u32 3, %s20
      %p198 = scmp.lt.s32.totalorder %s19, 1
      %s199 = scalar_select %p198, %s19, 1
      %p200 = scmp.lt.s32.totalorder %s197, 2
      %s201 = scalar_select %p200, %s197, 2
      %s202 = smul.addr %s199, 3
      %s203 = sadd.s32 %s201, %s202
      %s204 = smul.addr %s203, 8
      %s205 = scalar_lea.vmem %s4, %s204
      %p206 = scmp.lt.s32.totalorder %s19, 1
      %s207 = scalar_select %p206, %s19, 1
      %s208 = smul.addr %s207, 5
      %s209 = smul.addr %s208, 8
      %s210 = scalar_lea.vmem %s0, %s209
      %s211 = smul.u32 3, %s20
      %p212 = scmp.lt.s32.totalorder %s19, 1
      %s213 = scalar_select %p212, %s19, 1
      %p214 = scmp.lt.s32.totalorder %s211, 2
      %s215 = scalar_select %p214, %s211, 2
      %s216 = smul.addr %s213, 3
      %s217 = sadd.s32 %s215, %s216
      %s218 = smul.addr %s217, 8
      %s219 = scalar_lea.vmem %s4, %s218
      %s220 = smul.u32 3, %s20
      %s222 = smul.u32 %s20, 24
      %s223 = scalar_lea.vmem %s210, %s222
      %v224 = vld [vmem:[%s223] sm:$0xff]
      %v225 = vld [vmem:[%s223 + $0x8] sm:$0xff]
      %v226 = vld [vmem:[%s223 + $0x10] sm:$0xff]
      %v227 = vld [vmem:[%s223 + $0x18] sm:$0xff]
      %v228 = vld [vmem:[%s223 + $0x20] sm:$0x7]
      %v229 = vpack.c.bf16 %v225, %v224
      %v230 = vpack.c.bf16 %v226, %v226
      %v233 = vunpack.c.l.b16 %v229
      %v234 = vunpack.c.h.b16 %v229
      %v235 = vunpack.c.l.b16 %v230
      %v236 = vpack.c.b16 %v233, %v233
      %v237 = vpack.c.b16 %v234, %v234
      %v238 = vpack.c.b16 %v235, %v235
      %vm242 = vcmask 257024
      %243 = vst.msk [vmem:[#allocation2] sm:$0xf] %vm242, %v236
      %244 = vst.msk [vmem:[#allocation2 + $0xc] sm:$0xf] %vm242, %v237
      %245 = vst.msk [vmem:[#allocation2 + $0x18] sm:$0xf] %vm242, %v238
      %v246 = vpack.c.bf16 %v227, %v226
      %v248 = vunpack.c.l.b16 %v246
      %v249 = vunpack.c.h.b16 %v246
      %v250 = vpack.c.b16 %v248, %v248
      %v251 = vpack.c.b16 %v249, %v249
      %vm252 = vsmask.f32 3328
      %vm253 = vsmask.f32 7440
      %vm254 = vmor %vm252, %vm253
      %v256 = vshrl.u32 %v236, 16
      %v258 = vrot.slane %v256, 4
      %v259 = vshll.u32 %v236, 16
      %v261 = vrot.slane %v259, 5
      %v262 = vor.u32 %v258, %v261
      %v263 = vrot.slane %v262, 4
      %v265 = vshll.u32 %v237, 16
      %v267 = vrot.slane %v265, 5
      %v268 = vsel %vm254, %v263, %v267
      %v269 = vshrl.u32 %v237, 16
      %v271 = vrot.slane %v269, 4
      %v272 = vor.u32 %v271, %v267
      %v273 = vrot.slane %v272, 4
      %v275 = vshll.u32 %v250, 16
      %v277 = vrot.slane %v275, 5
      %v278 = vsel %vm254, %v273, %v277
      %v279 = vshrl.u32 %v250, 16
      %v281 = vrot.slane %v279, 4
      %v282 = vor.u32 %v281, %v277
      %v283 = vrot.slane %v282, 4
      %v285 = vshll.u32 %v251, 16
      %v287 = vrot.slane %v285, 5
      %v288 = vsel %vm254, %v283, %v287
      %289 = vrot.lane.b32.xlu0 %v268, 32
      %v290 = vpop.permute.xlu0 %289
      %291 = vrot.lane.b32.xlu0 %v278, 32
      %v292 = vpop.permute.xlu0 %291
      %293 = vrot.lane.b32.xlu0 %v288, 32
      %v294 = vpop.permute.xlu0 %293
      %vm298 = vcmask 519424
      %299 = vst.msk [vmem:[#allocation2] sm:$0xf] %vm298, %v290
      %300 = vst.msk [vmem:[#allocation2 + $0xc] sm:$0xf] %vm298, %v292
      %301 = vst.msk [vmem:[#allocation2 + $0x18] sm:$0xf] %vm298, %v294
      %vm302 = vcmask 1042432
      %vm303 = vcmask 1046532
      %vm304 = vmor %vm302, %vm303
      %v305 = vrot.slane %v236, 5
      %v306 = vrot.slane %v305, 4
      %v307 = vrot.slane %v237, 5
      %v308 = vsel %vm304, %v306, %v307
      %v309 = vrot.slane %v307, 4
      %v310 = vrot.slane %v250, 5
      %v311 = vsel %vm304, %v309, %v310
      %v312 = vrot.slane %v310, 4
      %v313 = vrot.slane %v251, 5
      %v314 = vsel %vm304, %v312, %v313
      %315 = vrot.lane.b32.xlu0 %v308, 64
      %v316 = vpop.permute.xlu0 %315
      %317 = vrot.lane.b32.xlu0 %v311, 64
      %v318 = vpop.permute.xlu0 %317
      %319 = vrot.lane.b32.xlu0 %v314, 64
      %v320 = vpop.permute.xlu0 %319
      %vm324 = vcmask 781824
      %325 = vst.msk [vmem:[#allocation2] sm:$0xf] %vm324, %v316
      %326 = vst.msk [vmem:[#allocation2 + $0xc] sm:$0xf] %vm324, %v318
      %327 = vst.msk [vmem:[#allocation2 + $0x18] sm:$0xf] %vm324, %v320
      %vm328 = vsmask.f32 2304
      %vm329 = vsmask.f32 6416
      %vm330 = vmor %vm328, %vm329
      %v331 = vrot.slane %v256, 5
      %v332 = vrot.slane %v259, 6
      %v333 = vor.u32 %v331, %v332
      %v334 = vrot.slane %v333, 4
      %v335 = vrot.slane %v269, 5
      %v336 = vrot.slane %v265, 6
      %v337 = vor.u32 %v335, %v336
      %v338 = vsel %vm330, %v334, %v337
      %v339 = vrot.slane %v337, 4
      %v340 = vrot.slane %v279, 5
      %v341 = vrot.slane %v275, 6
      %v342 = vor.u32 %v340, %v341
      %v343 = vsel %vm330, %v339, %v342
      %v344 = vrot.slane %v342, 4
      %v345 = vshrl.u32 %v251, 16
      %v347 = vrot.slane %v345, 5
      %v348 = vrot.slane %v285, 6
      %v349 = vor.u32 %v347, %v348
      %v350 = vsel %vm330, %v344, %v349
      %351 = vrot.lane.b32.xlu0 %v338, 96
      %v352 = vpop.permute.xlu0 %351
      %353 = vrot.lane.b32.xlu0 %v343, 96
      %v354 = vpop.permute.xlu0 %353
      %355 = vrot.lane.b32.xlu0 %v350, 96
      %v356 = vpop.permute.xlu0 %355
      %vm360 = vcmask 1044224
      %361 = vst.msk [vmem:[#allocation2] sm:$0xf] %vm360, %v352
      %362 = vst.msk [vmem:[#allocation2 + $0xc] sm:$0xf] %vm360, %v354
      %363 = vst.msk [vmem:[#allocation2 + $0x18] sm:$0xf] %vm360, %v356
      %vm364 = vcmask 1041408
      %vm365 = vcmask 1045508
      %vm366 = vmor %vm364, %vm365
      %v367 = vrot.slane %v236, 6
      %v368 = vrot.slane %v367, 4
      %v369 = vrot.slane %v237, 6
      %v370 = vsel %vm366, %v368, %v369
      %v371 = vrot.slane %v369, 4
      %v372 = vrot.slane %v250, 6
      %v373 = vsel %vm366, %v371, %v372
      %v374 = vrot.slane %v372, 4
      %v375 = vrot.slane %v251, 6
      %v376 = vsel %vm366, %v374, %v375
      %380 = vst.msk [vmem:[#allocation2 + $0x4] sm:$0xf] %vm242, %v370
      %381 = vst.msk [vmem:[#allocation2 + $0x10] sm:$0xf] %vm242, %v373
      %382 = vst.msk [vmem:[#allocation2 + $0x1c] sm:$0xf] %vm242, %v376
      %vm383 = vsmask.f32 1280
      %vm384 = vsmask.f32 5392
      %vm385 = vmor %vm383, %vm384
      %v386 = vrot.slane %v256, 6
      %v387 = vrot.slane %v259, 7
      %v388 = vor.u32 %v386, %v387
      %v389 = vrot.slane %v388, 4
      %v390 = vrot.slane %v269, 6
      %v391 = vrot.slane %v265, 7
      %v392 = vor.u32 %v390, %v391
      %v393 = vsel %vm385, %v389, %v392
      %v394 = vrot.slane %v392, 4
      %v395 = vrot.slane %v279, 6
      %v396 = vrot.slane %v275, 7
      %v397 = vor.u32 %v395, %v396
      %v398 = vsel %vm385, %v394, %v397
      %v399 = vrot.slane %v397, 4
      %v400 = vrot.slane %v345, 6
      %v401 = vrot.slane %v285, 7
      %v402 = vor.u32 %v400, %v401
      %v403 = vsel %vm385, %v399, %v402
      %404 = vrot.lane.b32.xlu0 %v393, 32
      %v405 = vpop.permute.xlu0 %404
      %406 = vrot.lane.b32.xlu0 %v398, 32
      %v407 = vpop.permute.xlu0 %406
      %408 = vrot.lane.b32.xlu0 %v403, 32
      %v409 = vpop.permute.xlu0 %408
      %413 = vst.msk [vmem:[#allocation2 + $0x4] sm:$0xf] %vm298, %v405
      %414 = vst.msk [vmem:[#allocation2 + $0x10] sm:$0xf] %vm298, %v407
      %415 = vst.msk [vmem:[#allocation2 + $0x1c] sm:$0xf] %vm298, %v409
      %vm416 = vcmask 1040384
      %vm417 = vcmask 1044484
      %vm418 = vmor %vm416, %vm417
      %v419 = vrot.slane %v236, 7
      %v420 = vrot.slane %v419, 4
      %v421 = vrot.slane %v237, 7
      %v422 = vsel %vm418, %v420, %v421
      %v423 = vrot.slane %v421, 4
      %v424 = vrot.slane %v250, 7
      %v425 = vsel %vm418, %v423, %v424
      %v426 = vrot.slane %v424, 4
      %v427 = vrot.slane %v251, 7
      %v428 = vsel %vm418, %v426, %v427
      %429 = vrot.lane.b32.xlu0 %v422, 64
      %v430 = vpop.permute.xlu0 %429
      %431 = vrot.lane.b32.xlu0 %v425, 64
      %v432 = vpop.permute.xlu0 %431
      %433 = vrot.lane.b32.xlu0 %v428, 64
      %v434 = vpop.permute.xlu0 %433
      %438 = vst.msk [vmem:[#allocation2 + $0x4] sm:$0xf] %vm324, %v430
      %439 = vst.msk [vmem:[#allocation2 + $0x10] sm:$0xf] %vm324, %v432
      %440 = vst.msk [vmem:[#allocation2 + $0x1c] sm:$0xf] %vm324, %v434
      %vm441 = vsmask.f32 256
      %vm442 = vsmask.f32 4368
      %vm443 = vmor %vm441, %vm442
      %v444 = vrot.slane %v256, 7
      %v445 = vrot.slane %v444, 4
      %v446 = vrot.slane %v269, 7
      %v447 = vor.u32 %v446, %v265
      %v448 = vsel %vm443, %v445, %v447
      %v449 = vrot.slane %v446, 4
      %v450 = vrot.slane %v279, 7
      %v451 = vor.u32 %v450, %v275
      %v452 = vsel %vm443, %v449, %v451
      %v453 = vrot.slane %v450, 4
      %v454 = vrot.slane %v345, 7
      %v455 = vor.u32 %v454, %v285
      %v456 = vsel %vm443, %v453, %v455
      %457 = vrot.lane.b32.xlu0 %v448, 96
      %v458 = vpop.permute.xlu0 %457
      %459 = vrot.lane.b32.xlu0 %v452, 96
      %v460 = vpop.permute.xlu0 %459
      %461 = vrot.lane.b32.xlu0 %v456, 96
      %v462 = vpop.permute.xlu0 %461
      %466 = vst.msk [vmem:[#allocation2 + $0x4] sm:$0xf] %vm360, %v458
      %467 = vst.msk [vmem:[#allocation2 + $0x10] sm:$0xf] %vm360, %v460
      %468 = vst.msk [vmem:[#allocation2 + $0x1c] sm:$0xf] %vm360, %v462
      %v469 = vpack.c.bf16 %v226, %v225
      %v470 = vpack.c.bf16 %v227, %v227
      %v473 = vunpack.c.l.b16 %v469
      %v474 = vunpack.c.h.b16 %v469
      %v475 = vunpack.c.l.b16 %v470
      %v476 = vpack.c.b16 %v473, %v473
      %v477 = vpack.c.b16 %v474, %v474
      %v478 = vpack.c.b16 %v475, %v475
      %482 = vst.msk [vmem:[#allocation2 + $0x8] sm:$0xf] %vm242, %v476
      %483 = vst.msk [vmem:[#allocation2 + $0x14] sm:$0xf] %vm242, %v477
      %484 = vst.msk [vmem:[#allocation2 + $0x20] sm:$0xf] %vm242, %v478
      %v485 = vpack.c.bf16 %v228, %v227
      %v487 = vunpack.c.l.b16 %v485
      %v488 = vunpack.c.h.b16 %v485
      %v489 = vpack.c.b16 %v487, %v487
      %v490 = vpack.c.b16 %v488, %v488
      %v492 = vshrl.u32 %v476, 16
      %v494 = vrot.slane %v492, 4
      %v495 = vshll.u32 %v476, 16
      %v497 = vrot.slane %v495, 5
      %v498 = vor.u32 %v494, %v497
      %v499 = vrot.slane %v498, 4
      %v501 = vshll.u32 %v477, 16
      %v503 = vrot.slane %v501, 5
      %v504 = vsel %vm254, %v499, %v503
      %v505 = vshrl.u32 %v477, 16
      %v507 = vrot.slane %v505, 4
      %v508 = vor.u32 %v507, %v503
      %v509 = vrot.slane %v508, 4
      %v511 = vshll.u32 %v489, 16
      %v513 = vrot.slane %v511, 5
      %v514 = vsel %vm254, %v509, %v513
      %v515 = vshrl.u32 %v489, 16
      %v517 = vrot.slane %v515, 4
      %v518 = vor.u32 %v517, %v513
      %v519 = vrot.slane %v518, 4
      %v521 = vshll.u32 %v490, 16
      %v523 = vrot.slane %v521, 5
      %v524 = vsel %vm254, %v519, %v523
      %525 = vrot.lane.b32.xlu0 %v504, 32
      %v526 = vpop.permute.xlu0 %525
      %527 = vrot.lane.b32.xlu0 %v514, 32
      %v528 = vpop.permute.xlu0 %527
      %529 = vrot.lane.b32.xlu0 %v524, 32
      %v530 = vpop.permute.xlu0 %529
      %534 = vst.msk [vmem:[#allocation2 + $0x8] sm:$0xf] %vm298, %v526
      %535 = vst.msk [vmem:[#allocation2 + $0x14] sm:$0xf] %vm298, %v528
      %536 = vst.msk [vmem:[#allocation2 + $0x20] sm:$0xf] %vm298, %v530
      %v537 = vrot.slane %v476, 5
      %v538 = vrot.slane %v537, 4
      %v539 = vrot.slane %v477, 5
      %v540 = vsel %vm304, %v538, %v539
      %v541 = vrot.slane %v539, 4
      %v542 = vrot.slane %v489, 5
      %v543 = vsel %vm304, %v541, %v542
      %v544 = vrot.slane %v542, 4
      %v545 = vrot.slane %v490, 5
      %v546 = vsel %vm304, %v544, %v545
      %547 = vrot.lane.b32.xlu0 %v540, 64
      %v548 = vpop.permute.xlu0 %547
      %549 = vrot.lane.b32.xlu0 %v543, 64
      %v550 = vpop.permute.xlu0 %549
      %551 = vrot.lane.b32.xlu0 %v546, 64
      %v552 = vpop.permute.xlu0 %551
      %556 = vst.msk [vmem:[#allocation2 + $0x8] sm:$0xf] %vm324, %v548
      %557 = vst.msk [vmem:[#allocation2 + $0x14] sm:$0xf] %vm324, %v550
      %558 = vst.msk [vmem:[#allocation2 + $0x20] sm:$0xf] %vm324, %v552
      %v559 = vrot.slane %v492, 5
      %v560 = vrot.slane %v495, 6
      %v561 = vor.u32 %v559, %v560
      %v562 = vrot.slane %v561, 4
      %v563 = vrot.slane %v505, 5
      %v564 = vrot.slane %v501, 6
      %v565 = vor.u32 %v563, %v564
      %v566 = vsel %vm330, %v562, %v565
      %v567 = vrot.slane %v565, 4
      %v568 = vrot.slane %v515, 5
      %v569 = vrot.slane %v511, 6
      %v570 = vor.u32 %v568, %v569
      %v571 = vsel %vm330, %v567, %v570
      %v572 = vrot.slane %v570, 4
      %v573 = vshrl.u32 %v490, 16
      %v575 = vrot.slane %v573, 5
      %v576 = vrot.slane %v521, 6
      %v577 = vor.u32 %v575, %v576
      %v578 = vsel %vm330, %v572, %v577
      %579 = vrot.lane.b32.xlu0 %v566, 96
      %v580 = vpop.permute.xlu0 %579
      %581 = vrot.lane.b32.xlu0 %v571, 96
      %v582 = vpop.permute.xlu0 %581
      %583 = vrot.lane.b32.xlu0 %v578, 96
      %v584 = vpop.permute.xlu0 %583
      %588 = vst.msk [vmem:[#allocation2 + $0x8] sm:$0xf] %vm360, %v580
      %589 = vst.msk [vmem:[#allocation2 + $0x14] sm:$0xf] %vm360, %v582
      %590 = vst.msk [vmem:[#allocation2 + $0x20] sm:$0xf] %vm360, %v584
      %v591 = vld [vmem:[#allocation2] sm:$0xff]
      %v592 = vld [vmem:[#allocation2 + $0x8] sm:$0xf]
      %v593 = vld [vmem:[#allocation2 + $0xc] sm:$0xff]
      %v594 = vld [vmem:[#allocation2 + $0x14] sm:$0xf]
      %v595 = vld [vmem:[#allocation2 + $0x18] sm:$0xff]
      %v596 = vld [vmem:[#allocation2 + $0x20] sm:$0xf]
      %v597 = vld [vmem:[%s1] sm:$0xf]
      %v598 = vld [vmem:[%s1 + $0x4] sm:$0xf]
      %v599 = vld [vmem:[%s1 + $0x8] sm:$0xf]
      %v600 = vld [vmem:[%s1 + $0xc] sm:$0xf]
      %v601 = vld [vmem:[%s1 + $0x10] sm:$0xf]
      %v602 = vld [vmem:[%s1 + $0x14] sm:$0xf]
      %v603 = vld [vmem:[%s1 + $0x18] sm:$0xf]
      %v604 = vld [vmem:[%s1 + $0x1c] sm:$0xf]
      %v605 = vld [vmem:[%s1 + $0x20] sm:$0xf]
      %v606 = vld [vmem:[%s1 + $0x24] sm:$0xf]
      %v607 = vld [vmem:[%s1 + $0x28] sm:$0xf]
      %v608 = vld [vmem:[%s1 + $0x2c] sm:$0xf]
      %v609 = vld [vmem:[%s1 + $0x30] sm:$0xf]
      %v610 = vld [vmem:[%s1 + $0x34] sm:$0xf]
      %v611 = vld [vmem:[%s1 + $0x38] sm:$0xf]
      %v612 = vld [vmem:[%s1 + $0x3c] sm:$0xf]
      %v613 = vld [vmem:[%s1 + $0x40] sm:$0xf]
      %v614 = vld [vmem:[%s1 + $0x44] sm:$0xf]
      %v615 = vld [vmem:[%s1 + $0x48] sm:$0xf]
      %v616 = vld [vmem:[%s1 + $0x4c] sm:$0xf]
      %v617 = vld [vmem:[%s1 + $0x50] sm:$0xf]
      %v618 = vld [vmem:[%s1 + $0x54] sm:$0xf]
      %v619 = vld [vmem:[%s1 + $0x58] sm:$0xf]
      %v620 = vld [vmem:[%s1 + $0x5c] sm:$0xf]
      %v621 = vld [vmem:[%s1 + $0x60] sm:$0xf]
      %v622 = vld [vmem:[%s1 + $0x64] sm:$0xf]
      %v623 = vld [vmem:[%s1 + $0x68] sm:$0xf]
      %v624 = vld [vmem:[%s1 + $0x6c] sm:$0xf]
      %v625 = vld [vmem:[%s1 + $0x70] sm:$0xf]
      %v626 = vld [vmem:[%s1 + $0x74] sm:$0xf]
      %v627 = vld [vmem:[%s1 + $0x78] sm:$0xf]
      %v628 = vld [vmem:[%s1 + $0x7c] sm:$0xf]
      %v629 = vld [vmem:[%s1 + $0x80] sm:$0xf]
      %v630 = vld [vmem:[%s1 + $0x84] sm:$0xf]
      %v631 = vld [vmem:[%s1 + $0x88] sm:$0xf]
      %v632 = vld [vmem:[%s1 + $0x8c] sm:$0xf]
      %v633 = vld [vmem:[%s1 + $0x90] sm:$0xf]
      %v634 = vld [vmem:[%s1 + $0x94] sm:$0xf]
      %v635 = vld [vmem:[%s1 + $0x98] sm:$0xf]
      %v636 = vld [vmem:[%s1 + $0x9c] sm:$0xf]
      %v637 = vld [vmem:[%s1 + $0xa0] sm:$0xf]
      %v638 = vld [vmem:[%s1 + $0xa4] sm:$0xf]
      %v639 = vld [vmem:[%s1 + $0xa8] sm:$0xf]
      %v640 = vld [vmem:[%s1 + $0xac] sm:$0xf]
      %v641 = vld [vmem:[%s1 + $0xb0] sm:$0xf]
      %v642 = vld [vmem:[%s1 + $0xb4] sm:$0xf]
      %v643 = vld [vmem:[%s1 + $0xb8] sm:$0xf]
      %v644 = vld [vmem:[%s1 + $0xbc] sm:$0xf]
      %v645 = vld [vmem:[%s2] sm:$0x1]
      %v647 = vlaneseq
      %v648 = vshrl.u32 %v647, 7
      %v649 = vsub.s32 0, %v648
      %v650 = vrot.slane %v645, %v649
      %v658 = vunpack.c.l.b16 %v591
      %v659 = vunpack.c.h.b16 %v591
      %v660 = vunpack.c.l.b16 %v592
      %v661 = vunpack.c.l.b16 %v593
      %v662 = vunpack.c.h.b16 %v593
      %v663 = vunpack.c.l.b16 %v594
      %v664 = vunpack.c.l.b16 %v595
      %v665 = vunpack.c.h.b16 %v595
      %v666 = vunpack.c.l.b16 %v596
      %v667 = vpack.c.b16 %v661, %v658
      %v668 = vpack.c.b16 %v662, %v659
      %v669 = vpack.c.b16 %v663, %v660
      %v670 = vpack.c.b16 %v664, %v664
      %v671 = vpack.c.b16 %v665, %v665
      %v672 = vpack.c.b16 %v666, %v666
      %v727 = vunpack.c.l.b16 %v597
      %v728 = vunpack.c.l.b16 %v598
      %v729 = vunpack.c.l.b16 %v599
      %v730 = vunpack.c.l.b16 %v600
      %v731 = vunpack.c.l.b16 %v601
      %v732 = vunpack.c.l.b16 %v602
      %v733 = vunpack.c.l.b16 %v603
      %v734 = vunpack.c.l.b16 %v604
      %v735 = vunpack.c.l.b16 %v605
      %v736 = vunpack.c.l.b16 %v606
      %v737 = vunpack.c.l.b16 %v607
      %v738 = vunpack.c.l.b16 %v608
      %v739 = vunpack.c.l.b16 %v609
      %v740 = vunpack.c.l.b16 %v610
      %v741 = vunpack.c.l.b16 %v611
      %v742 = vunpack.c.l.b16 %v612
      %v743 = vunpack.c.l.b16 %v613
      %v744 = vunpack.c.l.b16 %v614
      %v745 = vunpack.c.l.b16 %v615
      %v746 = vunpack.c.l.b16 %v616
      %v747 = vunpack.c.l.b16 %v617
      %v748 = vunpack.c.l.b16 %v618
      %v749 = vunpack.c.l.b16 %v619
      %v750 = vunpack.c.l.b16 %v620
      %v751 = vunpack.c.l.b16 %v621
      %v752 = vunpack.c.l.b16 %v622
      %v753 = vunpack.c.l.b16 %v623
      %v754 = vunpack.c.l.b16 %v624
      %v755 = vunpack.c.l.b16 %v625
      %v756 = vunpack.c.l.b16 %v626
      %v757 = vunpack.c.l.b16 %v627
      %v758 = vunpack.c.l.b16 %v628
      %v759 = vunpack.c.l.b16 %v629
      %v760 = vunpack.c.l.b16 %v630
      %v761 = vunpack.c.l.b16 %v631
      %v762 = vunpack.c.l.b16 %v632
      %v763 = vunpack.c.l.b16 %v633
      %v764 = vunpack.c.l.b16 %v634
      %v765 = vunpack.c.l.b16 %v635
      %v766 = vunpack.c.l.b16 %v636
      %v767 = vunpack.c.l.b16 %v637
      %v768 = vunpack.c.l.b16 %v638
      %v769 = vunpack.c.l.b16 %v639
      %v770 = vunpack.c.l.b16 %v640
      %v771 = vunpack.c.l.b16 %v641
      %v772 = vunpack.c.l.b16 %v642
      %v773 = vunpack.c.l.b16 %v643
      %v774 = vunpack.c.l.b16 %v644
      %v775 = vpack.c.b16 %v728, %v727
      %v776 = vpack.c.b16 %v730, %v729
      %v777 = vpack.c.b16 %v732, %v731
      %v778 = vpack.c.b16 %v734, %v733
      %v779 = vpack.c.b16 %v736, %v735
      %v780 = vpack.c.b16 %v738, %v737
      %v781 = vpack.c.b16 %v740, %v739
      %v782 = vpack.c.b16 %v742, %v741
      %v783 = vpack.c.b16 %v744, %v743
      %v784 = vpack.c.b16 %v746, %v745
      %v785 = vpack.c.b16 %v748, %v747
      %v786 = vpack.c.b16 %v750, %v749
      %v787 = vpack.c.b16 %v752, %v751
      %v788 = vpack.c.b16 %v754, %v753
      %v789 = vpack.c.b16 %v756, %v755
      %v790 = vpack.c.b16 %v758, %v757
      %v791 = vpack.c.b16 %v760, %v759
      %v792 = vpack.c.b16 %v762, %v761
      %v793 = vpack.c.b16 %v764, %v763
      %v794 = vpack.c.b16 %v766, %v765
      %v795 = vpack.c.b16 %v768, %v767
      %v796 = vpack.c.b16 %v770, %v769
      %v797 = vpack.c.b16 %v772, %v771
      %v798 = vpack.c.b16 %v774, %v773
      %823 = vmatprep.subr.bf16.mxu0 0
      %824 = vmatpush1.bf16.msra.mxu0 %v782
      %825 = vmatprep.subr.bf16.mxu0 0
      %826 = vmatpush1.bf16.msra.mxu0 %v781
      %827 = vmatprep.subr.bf16.mxu0 0
      %828 = vmatpush1.bf16.msra.mxu0 %v780
      %829 = vmatprep.subr.bf16.mxu0 0
      %830 = vmatpush1.bf16.msra.mxu0 %v779
      %831 = vmatprep.subr.bf16.mxu0 0
      %832 = vmatpush1.bf16.msra.mxu0 %v778
      %833 = vmatprep.subr.bf16.mxu0 0
      %834 = vmatpush1.bf16.msra.mxu0 %v777
      %835 = vmatprep.subr.bf16.mxu0 0
      %836 = vmatpush1.bf16.msra.mxu0 %v776
      %837 = vmatprep.subr.bf16.mxu0 0
      %838 = vmatpush1.bf16.msra.mxu0 %v775
      %839 = vmatprep.subr.bf16.mxu0 0
      %840 = vmatpush2.bf16.msra.mxu0 %v790
      %841 = vmatprep.subr.bf16.mxu0 0
      %842 = vmatpush2.bf16.msra.mxu0 %v789
      %843 = vmatprep.subr.bf16.mxu0 0
      %844 = vmatpush2.bf16.msra.mxu0 %v788
      %845 = vmatprep.subr.bf16.mxu0 0
      %846 = vmatpush2.bf16.msra.mxu0 %v787
      %847 = vmatprep.subr.bf16.mxu0 0
      %848 = vmatpush2.bf16.msra.mxu0 %v786
      %849 = vmatprep.subr.bf16.mxu0 0
      %850 = vmatpush2.bf16.msra.mxu0 %v785
      %851 = vmatprep.subr.bf16.mxu0 0
      %852 = vmatpush2.bf16.msra.mxu0 %v784
      %853 = vmatprep.subr.bf16.mxu0 0
      %854 = vmatpush2.bf16.msra.mxu0 %v783
      %855 = vmatprep.mubr.bf16.mxu0 %v668
      %856 = vmatmul.mubr.bf16.gmra.mxu0 %v667
      %v857 = vpop.f32.mrf.mxu0
      %v858 = vadd.f32 %v650, %v857
      %v859 = vpop.f32.mrf.mxu0
      %v860 = vpop.f32.mrf.mxu0
      %v861 = vadd.f32 %v650, %v860
      %v862 = vpop.f32.mrf.mxu0
      %863 = vmatprep.mubr.bf16.mxu0 %v671
      %864 = vmatmul.mubr.bf16.gmra.mxu0 %v670
      %v865 = vpop.f32.mrf.mxu0
      %v866 = vadd.f32 %v650, %v865
      %v867 = vpop.f32.mrf.mxu0
      %v868 = vpop.f32.mrf.mxu0
      %v869 = vpop.f32.mrf.mxu0
      %870 = vdwg.mxu0
      %871 = vmatprep.subr.bf16.mxu0 0
      %872 = vmatpush1.bf16.msra.mxu0 %v798
      %873 = vmatprep.subr.bf16.mxu0 0
      %874 = vmatpush1.bf16.msra.mxu0 %v797
      %875 = vmatprep.subr.bf16.mxu0 0
      %876 = vmatpush1.bf16.msra.mxu0 %v796
      %877 = vmatprep.subr.bf16.mxu0 0
      %878 = vmatpush1.bf16.msra.mxu0 %v795
      %879 = vmatprep.subr.bf16.mxu0 0
      %880 = vmatpush1.bf16.msra.mxu0 %v794
      %881 = vmatprep.subr.bf16.mxu0 0
      %882 = vmatpush1.bf16.msra.mxu0 %v793
      %883 = vmatprep.subr.bf16.mxu0 0
      %884 = vmatpush1.bf16.msra.mxu0 %v792
      %885 = vmatprep.subr.bf16.mxu0 0
      %886 = vmatpush1.bf16.msra.mxu0 %v791
      %887 = vmatprep.subr.bf16.mxu0 0
      %888 = vmatpush2.bf16.msra.mxu0 0
      %889 = vmatprep.subr.bf16.mxu0 0
      %890 = vmatpush2.bf16.msra.mxu0 0
      %891 = vmatprep.subr.bf16.mxu0 0
      %892 = vmatpush2.bf16.msra.mxu0 0
      %893 = vmatprep.subr.bf16.mxu0 0
      %894 = vmatpush2.bf16.msra.mxu0 0
      %895 = vmatprep.subr.bf16.mxu0 0
      %896 = vmatpush2.bf16.msra.mxu0 0
      %897 = vmatprep.subr.bf16.mxu0 0
      %898 = vmatpush2.bf16.msra.mxu0 0
      %899 = vmatprep.subr.bf16.mxu0 0
      %900 = vmatpush2.bf16.msra.mxu0 0
      %901 = vmatprep.subr.bf16.mxu0 0
      %902 = vmatpush2.bf16.msra.mxu0 0
      %903 = vmatprep.mubr.bf16.mxu0 0
      %904 = vmatmul.mubr.bf16.gmra.mxu0 %v669
      %v905 = vpop.f32.mrf.mxu0
      %v906 = vadd.f32 %v858, %v905
      %v907 = vpop.f32.mrf.mxu0
      %v908 = vpop.f32.mrf.mxu0
      %v909 = vadd.f32 %v861, %v908
      %v910 = vpop.f32.mrf.mxu0
      %911 = vmatprep.mubr.bf16.mxu0 0
      %912 = vmatmul.mubr.bf16.gmra.mxu0 %v672
      %v913 = vpop.f32.mrf.mxu0
      %v914 = vadd.f32 %v866, %v913
      %v915 = vpop.f32.mrf.mxu0
      %v916 = vpop.f32.mrf.mxu0
      %v917 = vpop.f32.mrf.mxu0
      %918 = vdwg.mxu0
      %vm919 = vcmask 64512
      %920 = vst.msk [vmem:[#allocation3] sm:$0xff] %vm919, %v906
      %921 = vst.msk [vmem:[#allocation3 + $0x8] sm:$0xff] %vm919, %v909
      %922 = vst.msk [vmem:[#allocation3 + $0x10] sm:$0xff] %vm919, %v914
      %v923 = vld [vmem:[%s3] sm:$0x1]
      %v924 = vld [vmem:[%s3 + $0x1] sm:$0x1]
      %p925 = scmp.eq.s32.totalorder %s20, 0
      // Predicated region
      $region37: #{tpu_custom_call.1} parent=35 // pred_check
        %p926 = pneg %p925
      $region38: #{tpu_custom_call.1} parent=35 // pred_check_branch
        %928 = sbr.rel (%p926) target = $region40
      $region39: #{tpu_custom_call.1} parent=35 // pred_region
        %vm929 = vcmask 57344
        %930 = vst.msk [vmem:[#allocation4] sm:$0x1] %vm929, 0.0
      $region40: #{tpu_custom_call.1} parent=35 // pred_fallthru
        _
      %v931 = vld [vmem:[#allocation4] sm:$0x1]
      loop: start=0, step=1, limit=24
      $region41: #{tpu_custom_call.1} parent=35 // loop_pre_header
        _
      $region42: #{tpu_custom_call.1} parent=35 // loop_header
        %s933 = sphi 0, %s937
        %p934 = scmp.ge.s32.totalorder %s933, 24
        %v938 = vphi %v931, %v1008
      $region43: #{tpu_custom_call.1} parent=35 // loop_header_branch
        %936 = sbr.rel (%p934) target = $region47
      $region44: #{tpu_custom_call.1} parent=35 // loop_body
        %s939 = scalar_lea.vmem [#allocation3], %s933
        %v940 = vld [vmem:[%s939] sm:$0x1]
        %vm941 = vcmp.eq.f32.partialorder %v938, 0.0
        %v942 = vsel %vm941, 1, 0
        %v943 = vcvt.s32.f32 %v942
        %vm944 = vcmp.ne.f32.partialorder %v938, 0.0
        %v945 = vsel %vm944, 1, 0
        %v946 = vcvt.s32.f32 %v945
        %vm947 = vcmask 57344
        %v948 = vsel %vm947, %v946, 0.0
        %949 = vadd.xlane.f32.xlu0 %v948
        %v950 = vpop.xlane.xlu0 %949
        %v951 = vrot.slane %v950, 4
        %v952 = vadd.f32 %v950, %v951
        %v953 = vrot.slane %v952, 2
        %v954 = vadd.f32 %v952, %v953
        %v955 = vrot.slane %v954, 1
        %v956 = vadd.f32 %v954, %v955
        %s957 = vtos %v956
        %p958 = scmp.lt.f32.partialorder %s957, 8.0
        %s959 = scalar_select %p958, 1, 0
        %s960 = scvt.s32.f32 %s959
        %v961 = vmul.f32 %v940, %v943
        %v962 = vstv %s960
        %v963 = vmul.f32 %v961, %v962
        %v964 = vsel %vm947, %v963, -inf
        %965 = vmax.xlane.f32.xlu0 %v964
        %v966 = vpop.xlane.xlu0 %965
        %v967 = vrot.slane %v966, 4
        %v968 = vmax.f32 %v966, %v967
        %v969 = vrot.slane %v968, 2
        %v970 = vmax.f32 %v968, %v969
        %v971 = vrot.slane %v970, 1
        %v972 = vmax.f32 %v970, %v971
        %s973 = vtos %v972
        %v974 = vstv %s973
        %vm975 = vcmp.eq.f32.partialorder %v963, %v974
        %v976 = vsel %vm975, %v923, 8.0
        %v977 = vsel %vm947, %v976, inf
        %978 = vmin.xlane.f32.xlu0 %v977
        %v979 = vpop.xlane.xlu0 %978
        %v980 = vrot.slane %v979, 4
        %v981 = vmin.f32 %v979, %v980
        %v982 = vrot.slane %v981, 2
        %v983 = vmin.f32 %v981, %v982
        %v984 = vrot.slane %v983, 1
        %v985 = vmin.f32 %v983, %v984
        %s986 = vtos %v985
        %p987 = scmp.gt.f32.partialorder %s973, 9.6
        %s988 = scalar_select %p987, 1, 0
        %s989 = scvt.s32.f32 %s988
        %v990 = vstv %s986
        %vm991 = vcmp.eq.f32.partialorder %v923, %v990
        %v992 = vstv %s989
        %v993 = vsel %vm991, %v992, 0.0
        %s994 = scalar_lea.vmem %s219, %s933
        %995 = vst.msk [vmem:[%s994] sm:$0x1] %vm947, %v993
        %vm996 = vcmp.ge.f32.partialorder %v990, %v924
        %v997 = vadd.f32 %v924, 2.0
        %vm998 = vcmp.lt.f32.partialorder %v990, %v997
        %vm999 = vmand %vm996, %vm998
        %v1000 = vsel %vm999, 1, 0
        %v1001 = vcvt.s32.f32 %v1000
        %s1002 = smul.f32 %s989, 12.0
        %v1003 = vstv %s1002
        %v1004 = vmul.f32 %v1001, %v1003
        %v1005 = vadd.f32 %v938, %v1004
        %v1006 = vsub.f32 %v1005, 1.0
        %v1007 = vmax.f32 %v1006, 0.0
        %v1008 = vmin.f32 %v1007, 11.0
      $region45: #{tpu_custom_call.1} parent=35 // loop_footer
        %s937 = sadd.s32 1, %s933
      $region46: #{tpu_custom_call.1} parent=35 // loop_footer_branch
        %932 = sbr.rel target = $region42
      $region47: #{tpu_custom_call.1} parent=35 // loop_exit
        _
      %vm1009 = vcmask 57344
      %1010 = vst.msk [vmem:[#allocation4] sm:$0x1] %vm1009, %v938
      %s1011 = smul.u32 3, %s20
      %p1012 = scmp.lt.s32.totalorder %s19, 1
      %s1013 = scalar_select %p1012, %s19, 1
      %p1014 = scmp.lt.s32.totalorder %s1011, 2
      %s1015 = scalar_select %p1014, %s1011, 2
      %s1016 = smul.addr %s1013, 3
      %s1017 = sadd.s32 %s1015, %s1016
      %s1018 = smul.addr %s1017, 8
      %s1019 = scalar_lea.vmem %s4, %s1018
      // Predicated region
      $region48: #{tpu_custom_call.1} parent=35 // pred_check
        %p1020 = pneg %p136
      $region49: #{tpu_custom_call.1} parent=35 // pred_check_branch
        %1022 = sbr.rel (%p1020) target = $region51
      $region50: #{tpu_custom_call.1} parent=35 // pred_region
        %s1023 = smul.u32 3, %s20
      $region51: #{tpu_custom_call.1} parent=35 // pred_fallthru
        _
    $region36: #{tpu_custom_call.1} parent=5 // pred_fallthru
      _
    %p1024 = scmp.le.s32.totalorder 2, %s10
    // Predicated region
    $region52: #{tpu_custom_call.1} parent=5 // pred_check
      %p1025 = pneg %p1024
    $region53: #{tpu_custom_call.1} parent=5 // pred_check_branch
      %1027 = sbr.rel (%p1025) target = $region55
    $region54: #{tpu_custom_call.1} parent=5 // pred_region
      %s1028 = ssub.s32 %s10, 2
      // Predicated region
      $region56: #{tpu_custom_call.1} parent=54 // pred_check
        %p1029 = pneg %p142
      $region57: #{tpu_custom_call.1} parent=54 // pred_check_branch
        %1031 = sbr.rel (%p1029) target = $region59
      $region58: #{tpu_custom_call.1} parent=54 // pred_region
        %s1032 = smul.u32 3, %s22
        %p1033 = scmp.lt.s32.totalorder %s21, 1
        %s1034 = scalar_select %p1033, %s21, 1
        %p1035 = scmp.lt.s32.totalorder %s1032, 2
        %s1036 = scalar_select %p1035, %s1032, 2
        %s1037 = smul.addr %s1034, 3
        %s1038 = sadd.s32 %s1036, %s1037
        %s1039 = smul.addr %s1038, 8
        %s1040 = scalar_lea.vmem %s4, %s1039
      $region59: #{tpu_custom_call.1} parent=54 // pred_fallthru
        _
    $region55: #{tpu_custom_call.1} parent=5 // pred_fallthru
      _
  $region6: #{tpu_custom_call.1} parent=0 // loop_footer
    %s14 = sadd.s32 1, %s10
  $region7: #{tpu_custom_call.1} parent=0 // loop_footer_branch
    %9 = sbr.rel target = $region3
  $region8: #{tpu_custom_call.1} parent=0 // loop_exit
    _

</llo_original>
